<compile_context>
chip_gen: v7x
topology: tpu7x:2x2x1
jax: 0.10.0
libtpu: 0.0.40
codegen_flags: <defaults>
</compile_context>

<pallas_src>
import math
from functools import partial

import numpy as np
import jax
import jax.numpy as jnp
from jax import lax
from jax.experimental import pallas as pl
from jax.experimental.pallas import tpu as pltpu


def _subpixel_dw_kernel(taps_ref, w_ref, g_ref, b_ref, o_ref, *, kk_eff, eps):
    """One (batch, spatial-tile) grid step.

    taps_ref : (1, kk_eff, COUT, THW)  pre-shifted, channel-expanded input taps
    w_ref    : (kk_eff, COUT, 1)       per-tap, per-output-channel conv weight
    g_ref    : (COUT, 1)               LayerNorm2d gamma
    b_ref    : (COUT, 1)               LayerNorm2d beta
    o_ref    : (1, COUT, THW)          conv + LN + GELU output (lane-dense spatial)
    """
    # Grouped ("depthwise-ish") conv as kk_eff VPU broadcast-FMAs. No MXU.
    acc = taps_ref[0, 0] * w_ref[0]                       # (COUT, THW) f32
    for t in range(1, kk_eff):                            # static unroll
        acc = acc + taps_ref[0, t] * w_ref[t]
    acc = acc.astype(jnp.float32)

    # LayerNorm2d: normalize over channels (sublane axis), biased variance.
    mean = jnp.mean(acc, axis=0, keepdims=True)           # (1, THW)
    var = jnp.mean(jnp.square(acc - mean), axis=0, keepdims=True)
    yn = (acc - mean) * lax.rsqrt(var + eps)
    yn = yn * g_ref[...] + b_ref[...]                     # (COUT, 1) lane-broadcast

    # Exact GELU (torch nn.GELU default, approximate='none').
    out = 0.5 * yn * (1.0 + lax.erf(yn * (1.0 / math.sqrt(2.0))))

    o_ref[0] = out.astype(o_ref.dtype)


def _pick_spatial_tile(hw, max_tile=8192):
    """Largest lane-dense (multiple-of-128) tile dividing hw, capped so the
    double-buffered tap block stays well inside v7x's 64 MiB VMEM."""
    if hw <= max_tile:
        return hw
    for t in range(max_tile - max_tile % 128, 0, -128):
        if hw % t == 0:
            return t
    return hw


def subpixel_dw_conv(x_nchw, w_conv, gamma, beta, *, K, r, c2, eps=1e-6):
    """SubPixelDWConv forward. x_nchw: (N, C1, H, W) -> (N, c2, H*r, W*r).
    w_conv: (COUT, C1//g, K, K) grouped-conv weight, g = gcd(C1, COUT).
    Conv bias is omitted because DWCNA/SubPixelDWConv default to bias=False."""
    N, C1, H, W = x_nchw.shape
    COUT = c2 * r * r
    g = math.gcd(C1, COUT)                         # DWCNA group count
    ipg, opg = C1 // g, COUT // g
    assert w_conv.shape == (COUT, ipg, K, K), (w_conv.shape, (COUT, ipg, K, K))
    pad = K // 2                                   # autopad(k, None, 1)
    HW = H * W
    kk_eff = K * K * ipg

    # ---- wrapper-side im2col of the grouped conv (pure XLA layout work) ----
    # taps[n, (kh*K+kw)*ipg+ii, oc, h*W+w] = x_pad[n, grp(oc)*ipg+ii, h+kh, w+kw]
    xp = jnp.pad(x_nchw, ((0, 0), (0, 0), (pad, pad), (pad, pad)))
    grp = np.arange(COUT) // opg                   # group of each output channel
    tap_list, w_list = [], []
    for kh in range(K):
        for kw in range(K):
            sl = xp[:, :, kh:kh + H, kw:kw + W]    # (N, C1, H, W)
            for ii in range(ipg):
                ci = grp * ipg + ii                # (COUT,) input channel per oc
                tap_list.append(sl[:, ci, :, :].reshape(N, COUT, HW))
                w_list.append(w_conv[:, ii, kh, kw])   # (COUT,)
    taps = jnp.stack(tap_list, axis=1).astype(jnp.float32)   # (N, kk_eff, COUT, HW)
    wtab = jnp.stack(w_list, axis=0)[:, :, None].astype(jnp.float32)  # (kk_eff, COUT, 1)

    thw = _pick_spatial_tile(HW)
    grid = (N, HW // thw)

    cost = pl.CostEstimate(
        flops=2 * N * HW * kk_eff * COUT + 12 * N * HW * COUT,
        transcendentals=N * HW * COUT,
        bytes_accessed=int(taps.size + wtab.size + 2 * COUT + N * COUT * HW) * 4,
    )

    y = pl.pallas_call(
        partial(_subpixel_dw_kernel, kk_eff=kk_eff, eps=eps),
        out_shape=jax.ShapeDtypeStruct((N, COUT, HW), jnp.float32),
        grid_spec=pltpu.PrefetchScalarGridSpec(
            num_scalar_prefetch=0,
            grid=grid,
            in_specs=[
                pl.BlockSpec((1, kk_eff, COUT, thw), lambda n, s: (n, 0, 0, s)),
                pl.BlockSpec((kk_eff, COUT, 1), lambda n, s: (0, 0, 0)),
                pl.BlockSpec((COUT, 1), lambda n, s: (0, 0)),
                pl.BlockSpec((COUT, 1), lambda n, s: (0, 0)),
            ],
            out_specs=pl.BlockSpec((1, COUT, thw), lambda n, s: (n, 0, s)),
        ),
        compiler_params=pltpu.CompilerParams(
            dimension_semantics=("parallel", "parallel")),
        cost_estimate=cost,
    )(taps, wtab, gamma.reshape(COUT, 1).astype(jnp.float32),
      beta.reshape(COUT, 1).astype(jnp.float32))

    # ---- PixelShuffle (pure layout glue, XLA) ----
    y = y.reshape(N, c2, r, r, H, W)
    y = jnp.transpose(y, (0, 1, 4, 2, 5, 3))
    return y.reshape(N, c2, H * r, W * r)


def _reference_forward(x_nchw, w_conv, gamma, beta, *, g, K, r, c2, eps=1e-6):
    """Pure-JAX reference (grouped conv + LayerNorm2d + exact GELU + PixelShuffle)."""
    N, C1, H, W = x_nchw.shape
    y = lax.conv_general_dilated(
        x_nchw, w_conv, window_strides=(1, 1), padding="SAME",
        dimension_numbers=("NCHW", "OIHW", "NCHW"), feature_group_count=g)
    mean = jnp.mean(y, axis=1, keepdims=True)
    var = jnp.mean(jnp.square(y - mean), axis=1, keepdims=True)
    yn = (y - mean) * lax.rsqrt(var + eps)
    yn = yn * gamma[None, :, None, None] + beta[None, :, None, None]
    yn = jax.nn.gelu(yn, approximate=False)
    yn = yn.reshape(N, c2, r, r, H, W)
    yn = jnp.transpose(yn, (0, 1, 4, 2, 5, 3))
    return yn.reshape(N, c2, H * r, W * r)


if __name__ == "__main__":
    # Module config: SubPixelDWConv(c1=4, c2=4, upscale_factor=2, kernel_size=3)
    N, c1, H, W = 2, 4, 16, 16
    c2, r, K = 4, 2, 3
    c_out = c2 * r * r            # 16
    g = math.gcd(c1, c_out)       # DWCNA groups (= 4 -> 1 input channel per group)

    key = jax.random.PRNGKey(0)
    k_x, k_w, k_g, k_b = jax.random.split(key, 4)

    x = jax.random.normal(k_x, (N, c1, H, W), dtype=jnp.float32)
    w_conv = 0.1 * jax.random.normal(k_w, (c_out, c1 // g, K, K), dtype=jnp.float32)
    gamma = 1.0 + 0.1 * jax.random.normal(k_g, (c_out,), dtype=jnp.float32)
    beta = 0.1 * jax.random.normal(k_b, (c_out,), dtype=jnp.float32)

    out = subpixel_dw_conv(x, w_conv, gamma, beta, K=K, r=r, c2=c2)
    out = jax.block_until_ready(out)

    ref = _reference_forward(x, w_conv, gamma, beta, g=g, K=K, r=r, c2=c2)
    ref = jax.block_until_ready(ref)

    assert out.shape == (N, c2, H * r, W * r), out.shape
    np.testing.assert_allclose(np.asarray(out), np.asarray(ref), rtol=1e-4, atol=1e-4)

    print("KERNEL_OK")
</pallas_src>

<mosaic_0001>
module attributes {stable_mosaic.version = 11 : i64} {
  func.func @_subpixel_dw_kernel(%arg0: i32, %arg1: i32, %arg2: memref<1x9x16x256xf32, #tpu.memory_space<vmem>>, %arg3: memref<9x16x1xf32, #tpu.memory_space<vmem>>, %arg4: memref<16x1xf32, #tpu.memory_space<vmem>>, %arg5: memref<16x1xf32, #tpu.memory_space<vmem>>, %arg6: memref<1x16x256xf32, #tpu.memory_space<vmem>>) attributes {dimension_semantics = [#tpu.dimension_semantics<parallel>, #tpu.dimension_semantics<parallel>], iteration_bounds = array<i64: 2, 1>, scalar_prefetch = 0 : i64, scratch_operands = 0 : i64, tpu.core_type = #tpu.core_type<tc>, window_params = [{transform_indices = @transform_0, window_bounds = array<i64: 1, 9, 16, 256>}, {pipeline_mode = #tpu.pipeline_mode<synchronous>, transform_indices = @transform_1, window_bounds = array<i64: 9, 16, 1>}, {pipeline_mode = #tpu.pipeline_mode<synchronous>, transform_indices = @transform_2, window_bounds = array<i64: 16, 1>}, {pipeline_mode = #tpu.pipeline_mode<synchronous>, transform_indices = @transform_3, window_bounds = array<i64: 16, 1>}, {transform_indices = @transform_4, window_bounds = array<i64: 1, 16, 256>}]} {
    %c0 = arith.constant 0 : index
    %c0_0 = arith.constant 0 : index
    %c0_1 = arith.constant 0 : index
    %c0_2 = arith.constant 0 : index
    %0 = vector.load %arg2[%c0, %c0_0, %c0_1, %c0_2] : memref<1x9x16x256xf32, #tpu.memory_space<vmem>>, vector<1x1x16x256xf32>
    %1 = vector.shape_cast %0 : vector<1x1x16x256xf32> to vector<16x256xf32>
    %c0_3 = arith.constant 0 : index
    %c0_4 = arith.constant 0 : index
    %c0_5 = arith.constant 0 : index
    %2 = vector.load %arg3[%c0_3, %c0_4, %c0_5] : memref<9x16x1xf32, #tpu.memory_space<vmem>>, vector<1x16x1xf32>
    %3 = vector.shape_cast %2 : vector<1x16x1xf32> to vector<16x1xf32>
    %4 = vector.broadcast %3 : vector<16x1xf32> to vector<16x256xf32>
    %5 = arith.mulf %1, %4 : vector<16x256xf32>
    %c0_6 = arith.constant 0 : index
    %c1 = arith.constant 1 : index
    %c0_7 = arith.constant 0 : index
    %c0_8 = arith.constant 0 : index
    %6 = vector.load %arg2[%c0_6, %c1, %c0_7, %c0_8] : memref<1x9x16x256xf32, #tpu.memory_space<vmem>>, vector<1x1x16x256xf32>
    %7 = vector.shape_cast %6 : vector<1x1x16x256xf32> to vector<16x256xf32>
    %c1_9 = arith.constant 1 : index
    %c0_10 = arith.constant 0 : index
    %c0_11 = arith.constant 0 : index
    %8 = vector.load %arg3[%c1_9, %c0_10, %c0_11] : memref<9x16x1xf32, #tpu.memory_space<vmem>>, vector<1x16x1xf32>
    %9 = vector.shape_cast %8 : vector<1x16x1xf32> to vector<16x1xf32>
    %10 = vector.broadcast %9 : vector<16x1xf32> to vector<16x256xf32>
    %11 = arith.mulf %7, %10 : vector<16x256xf32>
    %12 = arith.addf %5, %11 : vector<16x256xf32>
    %c0_12 = arith.constant 0 : index
    %c2 = arith.constant 2 : index
    %c0_13 = arith.constant 0 : index
    %c0_14 = arith.constant 0 : index
    %13 = vector.load %arg2[%c0_12, %c2, %c0_13, %c0_14] : memref<1x9x16x256xf32, #tpu.memory_space<vmem>>, vector<1x1x16x256xf32>
    %14 = vector.shape_cast %13 : vector<1x1x16x256xf32> to vector<16x256xf32>
    %c2_15 = arith.constant 2 : index
    %c0_16 = arith.constant 0 : index
    %c0_17 = arith.constant 0 : index
    %15 = vector.load %arg3[%c2_15, %c0_16, %c0_17] : memref<9x16x1xf32, #tpu.memory_space<vmem>>, vector<1x16x1xf32>
    %16 = vector.shape_cast %15 : vector<1x16x1xf32> to vector<16x1xf32>
    %17 = vector.broadcast %16 : vector<16x1xf32> to vector<16x256xf32>
    %18 = arith.mulf %14, %17 : vector<16x256xf32>
    %19 = arith.addf %12, %18 : vector<16x256xf32>
    %c0_18 = arith.constant 0 : index
    %c3 = arith.constant 3 : index
    %c0_19 = arith.constant 0 : index
    %c0_20 = arith.constant 0 : index
    %20 = vector.load %arg2[%c0_18, %c3, %c0_19, %c0_20] : memref<1x9x16x256xf32, #tpu.memory_space<vmem>>, vector<1x1x16x256xf32>
    %21 = vector.shape_cast %20 : vector<1x1x16x256xf32> to vector<16x256xf32>
    %c3_21 = arith.constant 3 : index
    %c0_22 = arith.constant 0 : index
    %c0_23 = arith.constant 0 : index
    %22 = vector.load %arg3[%c3_21, %c0_22, %c0_23] : memref<9x16x1xf32, #tpu.memory_space<vmem>>, vector<1x16x1xf32>
    %23 = vector.shape_cast %22 : vector<1x16x1xf32> to vector<16x1xf32>
    %24 = vector.broadcast %23 : vector<16x1xf32> to vector<16x256xf32>
    %25 = arith.mulf %21, %24 : vector<16x256xf32>
    %26 = arith.addf %19, %25 : vector<16x256xf32>
    %c0_24 = arith.constant 0 : index
    %c4 = arith.constant 4 : index
    %c0_25 = arith.constant 0 : index
    %c0_26 = arith.constant 0 : index
    %27 = vector.load %arg2[%c0_24, %c4, %c0_25, %c0_26] : memref<1x9x16x256xf32, #tpu.memory_space<vmem>>, vector<1x1x16x256xf32>
    %28 = vector.shape_cast %27 : vector<1x1x16x256xf32> to vector<16x256xf32>
    %c4_27 = arith.constant 4 : index
    %c0_28 = arith.constant 0 : index
    %c0_29 = arith.constant 0 : index
    %29 = vector.load %arg3[%c4_27, %c0_28, %c0_29] : memref<9x16x1xf32, #tpu.memory_space<vmem>>, vector<1x16x1xf32>
    %30 = vector.shape_cast %29 : vector<1x16x1xf32> to vector<16x1xf32>
    %31 = vector.broadcast %30 : vector<16x1xf32> to vector<16x256xf32>
    %32 = arith.mulf %28, %31 : vector<16x256xf32>
    %33 = arith.addf %26, %32 : vector<16x256xf32>
    %c0_30 = arith.constant 0 : index
    %c5 = arith.constant 5 : index
    %c0_31 = arith.constant 0 : index
    %c0_32 = arith.constant 0 : index
    %34 = vector.load %arg2[%c0_30, %c5, %c0_31, %c0_32] : memref<1x9x16x256xf32, #tpu.memory_space<vmem>>, vector<1x1x16x256xf32>
    %35 = vector.shape_cast %34 : vector<1x1x16x256xf32> to vector<16x256xf32>
    %c5_33 = arith.constant 5 : index
    %c0_34 = arith.constant 0 : index
    %c0_35 = arith.constant 0 : index
    %36 = vector.load %arg3[%c5_33, %c0_34, %c0_35] : memref<9x16x1xf32, #tpu.memory_space<vmem>>, vector<1x16x1xf32>
    %37 = vector.shape_cast %36 : vector<1x16x1xf32> to vector<16x1xf32>
    %38 = vector.broadcast %37 : vector<16x1xf32> to vector<16x256xf32>
    %39 = arith.mulf %35, %38 : vector<16x256xf32>
    %40 = arith.addf %33, %39 : vector<16x256xf32>
    %c0_36 = arith.constant 0 : index
    %c6 = arith.constant 6 : index
    %c0_37 = arith.constant 0 : index
    %c0_38 = arith.constant 0 : index
    %41 = vector.load %arg2[%c0_36, %c6, %c0_37, %c0_38] : memref<1x9x16x256xf32, #tpu.memory_space<vmem>>, vector<1x1x16x256xf32>
    %42 = vector.shape_cast %41 : vector<1x1x16x256xf32> to vector<16x256xf32>
    %c6_39 = arith.constant 6 : index
    %c0_40 = arith.constant 0 : index
    %c0_41 = arith.constant 0 : index
    %43 = vector.load %arg3[%c6_39, %c0_40, %c0_41] : memref<9x16x1xf32, #tpu.memory_space<vmem>>, vector<1x16x1xf32>
    %44 = vector.shape_cast %43 : vector<1x16x1xf32> to vector<16x1xf32>
    %45 = vector.broadcast %44 : vector<16x1xf32> to vector<16x256xf32>
    %46 = arith.mulf %42, %45 : vector<16x256xf32>
    %47 = arith.addf %40, %46 : vector<16x256xf32>
    %c0_42 = arith.constant 0 : index
    %c7 = arith.constant 7 : index
    %c0_43 = arith.constant 0 : index
    %c0_44 = arith.constant 0 : index
    %48 = vector.load %arg2[%c0_42, %c7, %c0_43, %c0_44] : memref<1x9x16x256xf32, #tpu.memory_space<vmem>>, vector<1x1x16x256xf32>
    %49 = vector.shape_cast %48 : vector<1x1x16x256xf32> to vector<16x256xf32>
    %c7_45 = arith.constant 7 : index
    %c0_46 = arith.constant 0 : index
    %c0_47 = arith.constant 0 : index
    %50 = vector.load %arg3[%c7_45, %c0_46, %c0_47] : memref<9x16x1xf32, #tpu.memory_space<vmem>>, vector<1x16x1xf32>
    %51 = vector.shape_cast %50 : vector<1x16x1xf32> to vector<16x1xf32>
    %52 = vector.broadcast %51 : vector<16x1xf32> to vector<16x256xf32>
    %53 = arith.mulf %49, %52 : vector<16x256xf32>
    %54 = arith.addf %47, %53 : vector<16x256xf32>
    %c0_48 = arith.constant 0 : index
    %c8 = arith.constant 8 : index
    %c0_49 = arith.constant 0 : index
    %c0_50 = arith.constant 0 : index
    %55 = vector.load %arg2[%c0_48, %c8, %c0_49, %c0_50] : memref<1x9x16x256xf32, #tpu.memory_space<vmem>>, vector<1x1x16x256xf32>
    %56 = vector.shape_cast %55 : vector<1x1x16x256xf32> to vector<16x256xf32>
    %c8_51 = arith.constant 8 : index
    %c0_52 = arith.constant 0 : index
    %c0_53 = arith.constant 0 : index
    %57 = vector.load %arg3[%c8_51, %c0_52, %c0_53] : memref<9x16x1xf32, #tpu.memory_space<vmem>>, vector<1x16x1xf32>
    %58 = vector.shape_cast %57 : vector<1x16x1xf32> to vector<16x1xf32>
    %59 = vector.broadcast %58 : vector<16x1xf32> to vector<16x256xf32>
    %60 = arith.mulf %56, %59 : vector<16x256xf32>
    %61 = arith.addf %54, %60 : vector<16x256xf32>
    %cst = arith.constant dense<0.000000e+00> : vector<256xf32>
    %62 = vector.multi_reduction <add>, %61, %cst [0] : vector<16x256xf32> to vector<256xf32>
    %63 = vector.shape_cast %62 : vector<256xf32> to vector<1x256xf32>
    %cst_54 = arith.constant 1.600000e+01 : f32
    %64 = vector.broadcast %cst_54 : f32 to vector<1x256xf32>
    %65 = arith.divf %63, %64 : vector<1x256xf32>
    %66 = vector.broadcast %65 : vector<1x256xf32> to vector<16x256xf32>
    %67 = arith.subf %61, %66 : vector<16x256xf32>
    %68 = arith.mulf %67, %67 : vector<16x256xf32>
    %cst_55 = arith.constant dense<0.000000e+00> : vector<256xf32>
    %69 = vector.multi_reduction <add>, %68, %cst_55 [0] : vector<16x256xf32> to vector<256xf32>
    %70 = vector.shape_cast %69 : vector<256xf32> to vector<1x256xf32>
    %cst_56 = arith.constant 1.600000e+01 : f32
    %71 = vector.broadcast %cst_56 : f32 to vector<1x256xf32>
    %72 = arith.divf %70, %71 : vector<1x256xf32>
    %73 = vector.broadcast %65 : vector<1x256xf32> to vector<16x256xf32>
    %74 = arith.subf %61, %73 : vector<16x256xf32>
    %cst_57 = arith.constant 9.99999997E-7 : f32
    %75 = vector.broadcast %cst_57 : f32 to vector<1x256xf32>
    %76 = arith.addf %72, %75 : vector<1x256xf32>
    %77 = math.rsqrt %76 : vector<1x256xf32>
    %78 = vector.broadcast %77 : vector<1x256xf32> to vector<16x256xf32>
    %79 = arith.mulf %74, %78 : vector<16x256xf32>
    %c0_58 = arith.constant 0 : index
    %c0_59 = arith.constant 0 : index
    %80 = vector.load %arg4[%c0_58, %c0_59] : memref<16x1xf32, #tpu.memory_space<vmem>>, vector<16x1xf32>
    %81 = vector.broadcast %80 : vector<16x1xf32> to vector<16x256xf32>
    %82 = arith.mulf %79, %81 : vector<16x256xf32>
    %c0_60 = arith.constant 0 : index
    %c0_61 = arith.constant 0 : index
    %83 = vector.load %arg5[%c0_60, %c0_61] : memref<16x1xf32, #tpu.memory_space<vmem>>, vector<16x1xf32>
    %84 = vector.broadcast %83 : vector<16x1xf32> to vector<16x256xf32>
    %85 = arith.addf %82, %84 : vector<16x256xf32>
    %cst_62 = arith.constant 5.000000e-01 : f32
    %86 = vector.broadcast %cst_62 : f32 to vector<16x256xf32>
    %87 = arith.mulf %86, %85 : vector<16x256xf32>
    %cst_63 = arith.constant 0.707106769 : f32
    %88 = vector.broadcast %cst_63 : f32 to vector<16x256xf32>
    %89 = arith.mulf %85, %88 : vector<16x256xf32>
    %90 = math.erf %89 : vector<16x256xf32>
    %cst_64 = arith.constant 1.000000e+00 : f32
    %91 = vector.broadcast %cst_64 : f32 to vector<16x256xf32>
    %92 = arith.addf %91, %90 : vector<16x256xf32>
    %93 = arith.mulf %87, %92 : vector<16x256xf32>
    %c0_65 = arith.constant 0 : index
    %c0_66 = arith.constant 0 : index
    %c0_67 = arith.constant 0 : index
    %94 = vector.load %arg6[%c0_65, %c0_66, %c0_67] : memref<1x16x256xf32, #tpu.memory_space<vmem>>, vector<1x16x256xf32>
    %95 = vector.shape_cast %94 : vector<1x16x256xf32> to vector<16x256xf32>
    %96 = vector.shape_cast %93 : vector<16x256xf32> to vector<1x16x256xf32>
    tpu.vector_store %arg6[%c0_65, %c0_66, %c0_67], %96 {strides = array<i32>} : memref<1x16x256xf32, #tpu.memory_space<vmem>>, vector<1x16x256xf32>,
    return
  }
  func.func @transform_0(%arg0: i32, %arg1: i32) -> (i32, i32, i32, i32) {
    %c0_i32 = arith.constant 0 : i32
    %c0_i32_0 = arith.constant 0 : i32
    %c0_i32_1 = arith.constant 0 : i32
    return %arg0, %c0_i32, %c0_i32_0, %arg1 : i32, i32, i32, i32
  }
  func.func @transform_1(%arg0: i32, %arg1: i32) -> (i32, i32, i32) {
    %c0_i32 = arith.constant 0 : i32
    %c0_i32_0 = arith.constant 0 : i32
    %c0_i32_1 = arith.constant 0 : i32
    %c0_i32_2 = arith.constant 0 : i32
    return %c0_i32, %c0_i32_0, %c0_i32_1 : i32, i32, i32
  }
  func.func @transform_2(%arg0: i32, %arg1: i32) -> (i32, i32) {
    %c0_i32 = arith.constant 0 : i32
    %c0_i32_0 = arith.constant 0 : i32
    %c0_i32_1 = arith.constant 0 : i32
    return %c0_i32, %c0_i32_0 : i32, i32
  }
  func.func @transform_3(%arg0: i32, %arg1: i32) -> (i32, i32) {
    %c0_i32 = arith.constant 0 : i32
    %c0_i32_0 = arith.constant 0 : i32
    %c0_i32_1 = arith.constant 0 : i32
    return %c0_i32, %c0_i32_0 : i32, i32
  }
  func.func @transform_4(%arg0: i32, %arg1: i32) -> (i32, i32, i32) {
    %c0_i32 = arith.constant 0 : i32
    %c0_i32_0 = arith.constant 0 : i32
    return %arg0, %c0_i32, %arg1 : i32, i32, i32
  }
}

</mosaic_0001>

<llo_original>
// kernel: tpu_custom_call.1
$region0: #{tpu_custom_call.1}
  #allocation0 [shape = 'u32[]', space=smem, size = 0x4, offset = 0x4, fixed_abs, tag = 'smem constant byte address 0x4 - core index']
  #allocation1 [shape = 'u32[144,128]{1,0:T(1,128)}', space=vmem, size = 0x12000, scoped, tag = 'internal scratch']
  %s0 = inlined_call_operand.hbm [shape: f32[2,9,16,256], index: 0, kind: input, shape index: {}]
  %s1 = inlined_call_operand.vmem [shape: f32[9,16,1], index: 1, kind: input, shape index: {}]
  %s2 = inlined_call_operand.vmem [shape: f32[16,1], index: 2, kind: input, shape index: {}]
  %s3 = inlined_call_operand.vmem [shape: f32[16,1], index: 3, kind: input, shape index: {}]
  %s4 = inlined_call_operand.hbm [shape: f32[2,16,256], index: 4, kind: output, shape index: {}]
  %s5 = sld [smem:[#allocation0]]
  $region53: #{tpu_custom_call.1} parent=0
    _
  %s7 = ssub.s32 1, %s5
  %s8 = scalar_select 0, %s7, %s5
  $region1: #{tpu_custom_call.1} parent=0
    #allocation2 [shape = 'u8[294912]{0}', space=vmem, size = 0x48000, scoped, tag = 'input window, operand 0']
    #allocation3 [shape = 's32[2]{0}', space=sflag, size = 0x8, scoped, tag = 'scoped memory for tpu_custom_call.1']
    #allocation4 [shape = 's32[2]{0}', space=sflag, size = 0x8, scoped, tag = 'scoped memory for tpu_custom_call.1']
    #allocation5 [shape = 'u8[32768]{0}', space=vmem, size = 0x8000, scoped, tag = 'output window, operand 0']
    %9 = vsyncpa [#allocation3], 0
    %s10 = scalar_lea.sflag [#allocation3], 1
    %11 = vsyncpa %s10, 0
    %12 = vsyncpa [#allocation4], 0
    %s13 = scalar_lea.sflag [#allocation4], 1
    %14 = vsyncpa %s13, 0
    loop: start=0, step=1, limit=4
    $region2: #{tpu_custom_call.1} parent=1 // loop_pre_header
      _
    $region3: #{tpu_custom_call.1} parent=1 // loop_header
      %s16 = sphi 0, %s20
      %p17 = scmp.ge.s32.totalorder %s16, 4
      %s23 = sphi 0, %s35
      %s24 = sphi 0, %s31
      %s25 = sphi 0, %s23
      %s26 = sphi 0, %s24
      %s27 = sphi 0, %s25
      %s28 = sphi 0, %s26
      %s40 = sphi 0, %s42
      %s43 = sphi 0, %s40
      %s44 = sphi 0, %s43
      %s60 = sphi 0, %s44
      %s64 = sphi 0, %s64
      %s66 = sphi 0, %s64
      %s67 = sphi 0, %s66
      %s81 = sphi 0, %s67
      %s85 = sphi 0, %s85
      %s87 = sphi 0, %s85
      %s88 = sphi 0, %s87
      %s102 = sphi 0, %s88
      %s106 = sphi 0, %s106
      %s108 = sphi 0, %s106
      %s109 = sphi 0, %s108
      %s123 = sphi 0, %s109
      %s131 = sphi 0, %s133
      %s134 = sphi 0, %s131
      %s135 = sphi 0, %s134
      %s151 = sphi 0, %s135
    $region4: #{tpu_custom_call.1} parent=1 // loop_header_branch
      %19 = sbr.rel (%p17) target = $region8
    $region5: #{tpu_custom_call.1} parent=1 // loop_body
      %s21 = ssub.s32 %s16, 1
      %s22 = ssub.s32 %s16, 2
      %s29 = sadd.s32 1, %s24
      %p30 = scmp.ge.s32.totalorder %s29, 1
      %s31 = scalar_select %p30, 0, %s29
      %s32 = sadd.s32 1, %s23
      %s33 = scalar_select %p30, %s32, %s23
      %p34 = scmp.ge.s32.totalorder %s33, 2
      %s35 = scalar_select %p34, 0, %s33
      %s36 = ssub.s32 %s23, %s35
      %s37 = ssub.s32 %s24, %s31
      %s38 = sor.u32 %s36, %s37
      %p39 = scmp.eq.s32.totalorder %s38, 0
      %s41 = sadd.s32 %s40, 1
      %s42 = scalar_select %p39, %s40, %s41
      %p45 = pneg %p39
      %p46 = scmp.eq.s32.totalorder %s16, 1
      %p47 = por %p45, %p46
      %p48 = scmp.ne.s32.totalorder %s40, %s43
      %p49 = scmp.eq.s32.totalorder %s16, 0
      %p50 = por %p48, %p49
      %p51 = scmp.ne.s32.totalorder %s40, %s43
      %p52 = scmp.eq.s32.totalorder %s21, 1
      %p53 = por %p51, %p52
      %p54 = scmp.ne.s32.totalorder %s43, %s44
      %p55 = scmp.eq.s32.totalorder %s21, 0
      %p56 = por %p54, %p55
      %p57 = scmp.ne.s32.totalorder %s43, %s44
      %p58 = scmp.eq.s32.totalorder %s22, 1
      %p59 = por %p57, %p58
      %p61 = scmp.ne.s32.totalorder %s44, %s60
      %p62 = scmp.eq.s32.totalorder %s22, 0
      %p63 = por %p61, %p62
      %s65 = sadd.s32 %s64, 1
      %p68 = scmp.eq.s32.totalorder %s16, 1
      %p69 = scmp.ne.s32.totalorder %s64, %s66
      %p70 = scmp.eq.s32.totalorder %s16, 0
      %p71 = por %p69, %p70
      %p72 = scmp.ne.s32.totalorder %s64, %s66
      %p73 = scmp.eq.s32.totalorder %s21, 1
      %p74 = por %p72, %p73
      %p75 = scmp.ne.s32.totalorder %s66, %s67
      %p76 = scmp.eq.s32.totalorder %s21, 0
      %p77 = por %p75, %p76
      %p78 = scmp.ne.s32.totalorder %s66, %s67
      %p79 = scmp.eq.s32.totalorder %s22, 1
      %p80 = por %p78, %p79
      %p82 = scmp.ne.s32.totalorder %s67, %s81
      %p83 = scmp.eq.s32.totalorder %s22, 0
      %p84 = por %p82, %p83
      %s86 = sadd.s32 %s85, 1
      %p89 = scmp.eq.s32.totalorder %s16, 1
      %p90 = scmp.ne.s32.totalorder %s85, %s87
      %p91 = scmp.eq.s32.totalorder %s16, 0
      %p92 = por %p90, %p91
      %p93 = scmp.ne.s32.totalorder %s85, %s87
      %p94 = scmp.eq.s32.totalorder %s21, 1
      %p95 = por %p93, %p94
      %p96 = scmp.ne.s32.totalorder %s87, %s88
      %p97 = scmp.eq.s32.totalorder %s21, 0
      %p98 = por %p96, %p97
      %p99 = scmp.ne.s32.totalorder %s87, %s88
      %p100 = scmp.eq.s32.totalorder %s22, 1
      %p101 = por %p99, %p100
      %p103 = scmp.ne.s32.totalorder %s88, %s102
      %p104 = scmp.eq.s32.totalorder %s22, 0
      %p105 = por %p103, %p104
      %s107 = sadd.s32 %s106, 1
      %p110 = scmp.eq.s32.totalorder %s16, 1
      %p111 = scmp.ne.s32.totalorder %s106, %s108
      %p112 = scmp.eq.s32.totalorder %s16, 0
      %p113 = por %p111, %p112
      %p114 = scmp.ne.s32.totalorder %s106, %s108
      %p115 = scmp.eq.s32.totalorder %s21, 1
      %p116 = por %p114, %p115
      %p117 = scmp.ne.s32.totalorder %s108, %s109
      %p118 = scmp.eq.s32.totalorder %s21, 0
      %p119 = por %p117, %p118
      %p120 = scmp.ne.s32.totalorder %s108, %s109
      %p121 = scmp.eq.s32.totalorder %s22, 1
      %p122 = por %p120, %p121
      %p124 = scmp.ne.s32.totalorder %s109, %s123
      %p125 = scmp.eq.s32.totalorder %s22, 0
      %p126 = por %p124, %p125
      %s127 = ssub.s32 %s23, %s35
      %s128 = ssub.s32 %s24, %s31
      %s129 = sor.u32 %s127, %s128
      %p130 = scmp.eq.s32.totalorder %s129, 0
      %s132 = sadd.s32 %s131, 1
      %s133 = scalar_select %p130, %s131, %s132
      %p136 = pneg %p130
      %p137 = scmp.eq.s32.totalorder %s16, 1
      %p138 = por %p136, %p137
      %p139 = scmp.ne.s32.totalorder %s131, %s134
      %p140 = scmp.eq.s32.totalorder %s16, 0
      %p141 = por %p139, %p140
      %p142 = scmp.ne.s32.totalorder %s131, %s134
      %p143 = scmp.eq.s32.totalorder %s21, 1
      %p144 = por %p142, %p143
      %p145 = scmp.ne.s32.totalorder %s134, %s135
      %p146 = scmp.eq.s32.totalorder %s21, 0
      %p147 = por %p145, %p146
      %p148 = scmp.ne.s32.totalorder %s134, %s135
      %p149 = scmp.eq.s32.totalorder %s22, 1
      %p150 = por %p148, %p149
      %p152 = scmp.ne.s32.totalorder %s135, %s151
      %p153 = scmp.eq.s32.totalorder %s22, 0
      %p154 = por %p152, %p153
      %p155 = scmp.le.s32.totalorder 1, %s16
      %p156 = scmp.lt.s32.totalorder %s16, 3
      %p157 = pnand %p155, %p156
      %p158 = pneg %p157
      // Predicated region
      $region9: #{tpu_custom_call.1} parent=5 // pred_check
        _
      $region10: #{tpu_custom_call.1} parent=5 // pred_check_branch
        %160 = sbr.rel (%p157) target = $region12
      $region11: #{tpu_custom_call.1} parent=5 // pred_region
        %s161 = ssub.s32 %s16, 1
        // Predicated region
        $region13: #{tpu_custom_call.1} parent=11 // pred_check
          %p162 = pneg %p77
        $region14: #{tpu_custom_call.1} parent=11 // pred_check_branch
          %164 = sbr.rel (%p162) target = $region16
        $region15: #{tpu_custom_call.1} parent=11 // pred_region
          _
        $region16: #{tpu_custom_call.1} parent=11 // pred_fallthru
          _
        // Predicated region
        $region17: #{tpu_custom_call.1} parent=11 // pred_check
          %p165 = pneg %p98
        $region18: #{tpu_custom_call.1} parent=11 // pred_check_branch
          %167 = sbr.rel (%p165) target = $region20
        $region19: #{tpu_custom_call.1} parent=11 // pred_region
          _
        $region20: #{tpu_custom_call.1} parent=11 // pred_fallthru
          _
        // Predicated region
        $region21: #{tpu_custom_call.1} parent=11 // pred_check
          %p168 = pneg %p119
        $region22: #{tpu_custom_call.1} parent=11 // pred_check_branch
          %170 = sbr.rel (%p168) target = $region24
        $region23: #{tpu_custom_call.1} parent=11 // pred_region
          _
        $region24: #{tpu_custom_call.1} parent=11 // pred_fallthru
          _
      $region12: #{tpu_custom_call.1} parent=5 // pred_fallthru
        _
      %p171 = scmp.lt.s32.totalorder %s16, 2
      // Predicated region
      $region25: #{tpu_custom_call.1} parent=5 // pred_check
        %p172 = pneg %p171
      $region26: #{tpu_custom_call.1} parent=5 // pred_check_branch
        %174 = sbr.rel (%p172) target = $region28
      $region27: #{tpu_custom_call.1} parent=5 // pred_region
        // Predicated region
        $region29: #{tpu_custom_call.1} parent=27 // pred_check
          %p175 = pneg %p50
        $region30: #{tpu_custom_call.1} parent=27 // pred_check_branch
          %177 = sbr.rel (%p175) target = $region32
        $region31: #{tpu_custom_call.1} parent=27 // pred_region
          %s178 = sand.u32 %s40, 1
          %s179 = scalar_lea.sflag [#allocation3], %s178
          %s180 = sand.u32 %s40, 1
          %s181 = smul.addr %s180, 288
          %s182 = scalar_lea.vmem [#allocation2], %s181
          %s183 = smul.u32 2, %s24
          %s185 = ssub.s32 4608, 4608
          %186 = vsyncadd %s179, %s185
          %s187 = smul.addr %s23, 36
          %s188 = sadd.s32 %s183, %s187
          %s189 = smul.addr %s188, 128
          %s190 = scalar_lea.hbm %s0, %s189
          %s191 = sshll.u32 %s182, 4
          %s192 = int_to_ptr.vmem [resolvable:$true] %s191
          %197 = dma.hbm_to_vmem [thread:$0]  %s190, 4608, %s192, %s179, 256, 256, 16
        $region32: #{tpu_custom_call.1} parent=27 // pred_fallthru
          _
      $region28: #{tpu_custom_call.1} parent=5 // pred_fallthru
        _
      %p198 = scmp.le.s32.totalorder 1, %s16
      %p199 = scmp.lt.s32.totalorder %s16, 3
      %p200 = pnand %p198, %p199
      %p201 = pneg %p200
      // Predicated region
      $region33: #{tpu_custom_call.1} parent=5 // pred_check
        _
      $region34: #{tpu_custom_call.1} parent=5 // pred_check_branch
        %203 = sbr.rel (%p200) target = $region36
      $region35: #{tpu_custom_call.1} parent=5 // pred_region
        %s204 = ssub.s32 %s16, 1
        %s205 = sand.u32 %s43, 1
        %s206 = scalar_lea.sflag [#allocation3], %s205
        %s207 = sand.u32 %s43, 1
        %s208 = smul.addr %s207, 288
        %s209 = scalar_lea.vmem [#allocation2], %s208
        // Predicated region
        $region37: #{tpu_custom_call.1} parent=35 // pred_check
          %p210 = pneg %p56
        $region38: #{tpu_custom_call.1} parent=35 // pred_check_branch
          %212 = sbr.rel (%p210) target = $region40
        $region39: #{tpu_custom_call.1} parent=35 // pred_region
          %213 = dma.done %s206, 4608
        $region40: #{tpu_custom_call.1} parent=35 // pred_fallthru
          _
        %s214 = sand.u32 %s43, 1
        %s215 = scalar_lea.sflag [#allocation3], %s214
        %s216 = sand.u32 %s43, 1
        %s217 = smul.addr %s216, 288
        %s218 = scalar_lea.vmem [#allocation2], %s217
        %p219 = pneg %p56
        %p220 = pneg %p53
        %p221 = pneg %p77
        %p222 = pneg %p74
        %p223 = pneg %p98
        %p224 = pneg %p95
        %p225 = pneg %p119
        %p226 = pneg %p116
        %p227 = pneg %p147
        %p228 = pneg %p144
        %s229 = sand.u32 %s134, 1
        %s230 = scalar_lea.sflag [#allocation4], %s229
        %s231 = sand.u32 %s134, 1
        %s232 = smul.addr %s231, 32
        %s233 = scalar_lea.vmem [#allocation5], %s232
        %s234 = smul.u32 2, %s26
        %s235 = smul.u32 2, %s26
        %v236 = vld [vmem:[%s209] sm:$0xff]
        %v237 = vld [vmem:[%s209 + $0x8] sm:$0xff]
        %v238 = vld [vmem:[%s209 + $0x10] sm:$0xff]
        %v239 = vld [vmem:[%s209 + $0x18] sm:$0xff]
        %v240 = vld [vmem:[%s1] sm:$0xff]
        %v241 = vld [vmem:[%s1 + $0x8] sm:$0xff]
        %243 = vset.pattern.permute.xlu0 0
        %244 = vperm.xlu0 %243, %v240
        %v245 = vpop.permute.xlu0 %244
        %248 = vset.pattern.permute.xlu0 0
        %249 = vperm.xlu0 %248, %v241
        %v250 = vpop.permute.xlu0 %249
        %v252 = vmul.f32 %v236, %v245
        %v253 = vmul.f32 %v237, %v245
        %v254 = vmul.f32 %v238, %v250
        %v255 = vmul.f32 %v239, %v250
        %s256 = scalar_lea.vmem %s209, 32 [#allocation2]
        %v257 = vld [vmem:[%s256] sm:$0xff]
        %v258 = vld [vmem:[%s256 + $0x8] sm:$0xff]
        %v259 = vld [vmem:[%s256 + $0x10] sm:$0xff]
        %v260 = vld [vmem:[%s256 + $0x18] sm:$0xff]
        %s261 = scalar_lea.vmem %s1, 16
        %v262 = vld [vmem:[%s261] sm:$0xff]
        %v263 = vld [vmem:[%s261 + $0x8] sm:$0xff]
        %265 = vset.pattern.permute.xlu0 0
        %266 = vperm.xlu0 %265, %v262
        %v267 = vpop.permute.xlu0 %266
        %270 = vset.pattern.permute.xlu0 0
        %271 = vperm.xlu0 %270, %v263
        %v272 = vpop.permute.xlu0 %271
        %v274 = vmul.f32 %v257, %v267
        %v275 = vmul.f32 %v258, %v267
        %v276 = vmul.f32 %v259, %v272
        %v277 = vmul.f32 %v260, %v272
        %v278 = vadd.f32 %v252, %v274
        %v279 = vadd.f32 %v253, %v275
        %v280 = vadd.f32 %v254, %v276
        %v281 = vadd.f32 %v255, %v277
        %s282 = scalar_lea.vmem %s209, 64 [#allocation2]
        %v283 = vld [vmem:[%s282] sm:$0xff]
        %v284 = vld [vmem:[%s282 + $0x8] sm:$0xff]
        %v285 = vld [vmem:[%s282 + $0x10] sm:$0xff]
        %v286 = vld [vmem:[%s282 + $0x18] sm:$0xff]
        %s287 = scalar_lea.vmem %s1, 32
        %v288 = vld [vmem:[%s287] sm:$0xff]
        %v289 = vld [vmem:[%s287 + $0x8] sm:$0xff]
        %291 = vset.pattern.permute.xlu0 0
        %292 = vperm.xlu0 %291, %v288
        %v293 = vpop.permute.xlu0 %292
        %296 = vset.pattern.permute.xlu0 0
        %297 = vperm.xlu0 %296, %v289
        %v298 = vpop.permute.xlu0 %297
        %v300 = vmul.f32 %v283, %v293
        %v301 = vmul.f32 %v284, %v293
        %v302 = vmul.f32 %v285, %v298
        %v303 = vmul.f32 %v286, %v298
        %v304 = vadd.f32 %v278, %v300
        %v305 = vadd.f32 %v279, %v301
        %v306 = vadd.f32 %v280, %v302
        %v307 = vadd.f32 %v281, %v303
        %s308 = scalar_lea.vmem %s209, 96 [#allocation2]
        %v309 = vld [vmem:[%s308] sm:$0xff]
        %v310 = vld [vmem:[%s308 + $0x8] sm:$0xff]
        %v311 = vld [vmem:[%s308 + $0x10] sm:$0xff]
        %v312 = vld [vmem:[%s308 + $0x18] sm:$0xff]
        %s313 = scalar_lea.vmem %s1, 48
        %v314 = vld [vmem:[%s313] sm:$0xff]
        %v315 = vld [vmem:[%s313 + $0x8] sm:$0xff]
        %317 = vset.pattern.permute.xlu0 0
        %318 = vperm.xlu0 %317, %v314
        %v319 = vpop.permute.xlu0 %318
        %322 = vset.pattern.permute.xlu0 0
        %323 = vperm.xlu0 %322, %v315
        %v324 = vpop.permute.xlu0 %323
        %v326 = vmul.f32 %v309, %v319
        %v327 = vmul.f32 %v310, %v319
        %v328 = vmul.f32 %v311, %v324
        %v329 = vmul.f32 %v312, %v324
        %v330 = vadd.f32 %v304, %v326
        %v331 = vadd.f32 %v305, %v327
        %v332 = vadd.f32 %v306, %v328
        %v333 = vadd.f32 %v307, %v329
        %s334 = scalar_lea.vmem %s209, 128 [#allocation2]
        %v335 = vld [vmem:[%s334] sm:$0xff]
        %v336 = vld [vmem:[%s334 + $0x8] sm:$0xff]
        %v337 = vld [vmem:[%s334 + $0x10] sm:$0xff]
        %v338 = vld [vmem:[%s334 + $0x18] sm:$0xff]
        %s339 = scalar_lea.vmem %s1, 64
        %v340 = vld [vmem:[%s339] sm:$0xff]
        %v341 = vld [vmem:[%s339 + $0x8] sm:$0xff]
        %343 = vset.pattern.permute.xlu0 0
        %344 = vperm.xlu0 %343, %v340
        %v345 = vpop.permute.xlu0 %344
        %348 = vset.pattern.permute.xlu0 0
        %349 = vperm.xlu0 %348, %v341
        %v350 = vpop.permute.xlu0 %349
        %v352 = vmul.f32 %v335, %v345
        %v353 = vmul.f32 %v336, %v345
        %v354 = vmul.f32 %v337, %v350
        %v355 = vmul.f32 %v338, %v350
        %v356 = vadd.f32 %v330, %v352
        %v357 = vadd.f32 %v331, %v353
        %v358 = vadd.f32 %v332, %v354
        %v359 = vadd.f32 %v333, %v355
        %s360 = scalar_lea.vmem %s209, 160 [#allocation2]
        %v361 = vld [vmem:[%s360] sm:$0xff]
        %v362 = vld [vmem:[%s360 + $0x8] sm:$0xff]
        %v363 = vld [vmem:[%s360 + $0x10] sm:$0xff]
        %v364 = vld [vmem:[%s360 + $0x18] sm:$0xff]
        %s365 = scalar_lea.vmem %s1, 80
        %v366 = vld [vmem:[%s365] sm:$0xff]
        %v367 = vld [vmem:[%s365 + $0x8] sm:$0xff]
        %369 = vset.pattern.permute.xlu0 0
        %370 = vperm.xlu0 %369, %v366
        %v371 = vpop.permute.xlu0 %370
        %374 = vset.pattern.permute.xlu0 0
        %375 = vperm.xlu0 %374, %v367
        %v376 = vpop.permute.xlu0 %375
        %v378 = vmul.f32 %v361, %v371
        %v379 = vmul.f32 %v362, %v371
        %v380 = vmul.f32 %v363, %v376
        %v381 = vmul.f32 %v364, %v376
        %v382 = vadd.f32 %v356, %v378
        %v383 = vadd.f32 %v357, %v379
        %v384 = vadd.f32 %v358, %v380
        %v385 = vadd.f32 %v359, %v381
        %s386 = scalar_lea.vmem %s209, 192 [#allocation2]
        %v387 = vld [vmem:[%s386] sm:$0xff]
        %v388 = vld [vmem:[%s386 + $0x8] sm:$0xff]
        %v389 = vld [vmem:[%s386 + $0x10] sm:$0xff]
        %v390 = vld [vmem:[%s386 + $0x18] sm:$0xff]
        %s391 = scalar_lea.vmem %s1, 96
        %v392 = vld [vmem:[%s391] sm:$0xff]
        %v393 = vld [vmem:[%s391 + $0x8] sm:$0xff]
        %395 = vset.pattern.permute.xlu0 0
        %396 = vperm.xlu0 %395, %v392
        %v397 = vpop.permute.xlu0 %396
        %400 = vset.pattern.permute.xlu0 0
        %401 = vperm.xlu0 %400, %v393
        %v402 = vpop.permute.xlu0 %401
        %v404 = vmul.f32 %v387, %v397
        %v405 = vmul.f32 %v388, %v397
        %v406 = vmul.f32 %v389, %v402
        %v407 = vmul.f32 %v390, %v402
        %v408 = vadd.f32 %v382, %v404
        %v409 = vadd.f32 %v383, %v405
        %v410 = vadd.f32 %v384, %v406
        %v411 = vadd.f32 %v385, %v407
        %s412 = scalar_lea.vmem %s209, 224 [#allocation2]
        %v413 = vld [vmem:[%s412] sm:$0xff]
        %v414 = vld [vmem:[%s412 + $0x8] sm:$0xff]
        %v415 = vld [vmem:[%s412 + $0x10] sm:$0xff]
        %v416 = vld [vmem:[%s412 + $0x18] sm:$0xff]
        %s417 = scalar_lea.vmem %s1, 112
        %v418 = vld [vmem:[%s417] sm:$0xff]
        %v419 = vld [vmem:[%s417 + $0x8] sm:$0xff]
        %421 = vset.pattern.permute.xlu0 0
        %422 = vperm.xlu0 %421, %v418
        %v423 = vpop.permute.xlu0 %422
        %426 = vset.pattern.permute.xlu0 0
        %427 = vperm.xlu0 %426, %v419
        %v428 = vpop.permute.xlu0 %427
        %v430 = vmul.f32 %v413, %v423
        %v431 = vmul.f32 %v414, %v423
        %v432 = vmul.f32 %v415, %v428
        %v433 = vmul.f32 %v416, %v428
        %v434 = vadd.f32 %v408, %v430
        %v435 = vadd.f32 %v409, %v431
        %v436 = vadd.f32 %v410, %v432
        %v437 = vadd.f32 %v411, %v433
        %s438 = scalar_lea.vmem %s209, 256 [#allocation2]
        %v439 = vld [vmem:[%s438] sm:$0xff]
        %v440 = vld [vmem:[%s438 + $0x8] sm:$0xff]
        %v441 = vld [vmem:[%s438 + $0x10] sm:$0xff]
        %v442 = vld [vmem:[%s438 + $0x18] sm:$0xff]
        %s443 = scalar_lea.vmem %s1, 128
        %v444 = vld [vmem:[%s443] sm:$0xff]
        %v445 = vld [vmem:[%s443 + $0x8] sm:$0xff]
        %447 = vset.pattern.permute.xlu0 0
        %448 = vperm.xlu0 %447, %v444
        %v449 = vpop.permute.xlu0 %448
        %452 = vset.pattern.permute.xlu0 0
        %453 = vperm.xlu0 %452, %v445
        %v454 = vpop.permute.xlu0 %453
        %v456 = vmul.f32 %v439, %v449
        %v457 = vmul.f32 %v440, %v449
        %v458 = vmul.f32 %v441, %v454
        %v459 = vmul.f32 %v442, %v454
        %v460 = vadd.f32 %v434, %v456
        %v461 = vadd.f32 %v435, %v457
        %v462 = vadd.f32 %v436, %v458
        %v463 = vadd.f32 %v437, %v459
        %v464 = vadd.f32 %v460, %v462
        %v465 = vrot.slane %v464, 4
        %v466 = vadd.f32 %v464, %v465
        %v467 = vrot.slane %v466, 2
        %v468 = vadd.f32 %v466, %v467
        %v469 = vrot.slane %v468, 1
        %v470 = vadd.f32 %v468, %v469
        %v471 = vadd.f32 %v461, %v463
        %v472 = vrot.slane %v471, 4
        %v473 = vadd.f32 %v471, %v472
        %v474 = vrot.slane %v473, 2
        %v475 = vadd.f32 %v473, %v474
        %v476 = vrot.slane %v475, 1
        %v477 = vadd.f32 %v475, %v476
        %v478 = vrcp.pop 16.0
        %v479 = vmul.f32 %v470, %v478
        %v480 = vmul.f32 %v477, %v478
        %v481 = vsub.f32 %v460, %v479
        %v482 = vsub.f32 %v461, %v480
        %v483 = vsub.f32 %v462, %v479
        %v484 = vsub.f32 %v463, %v480
        %v485 = vmul.f32 %v481, %v481
        %v486 = vmul.f32 %v482, %v482
        %v487 = vmul.f32 %v483, %v483
        %v488 = vmul.f32 %v484, %v484
        %v489 = vadd.f32 %v485, %v487
        %v490 = vrot.slane %v489, 4
        %v491 = vadd.f32 %v489, %v490
        %v492 = vrot.slane %v491, 2
        %v493 = vadd.f32 %v491, %v492
        %v494 = vrot.slane %v493, 1
        %v495 = vadd.f32 %v493, %v494
        %v496 = vadd.f32 %v486, %v488
        %v497 = vrot.slane %v496, 4
        %v498 = vadd.f32 %v496, %v497
        %v499 = vrot.slane %v498, 2
        %v500 = vadd.f32 %v498, %v499
        %v501 = vrot.slane %v500, 1
        %v502 = vadd.f32 %v500, %v501
        %v503 = vmul.f32 %v495, %v478
        %v504 = vmul.f32 %v502, %v478
        %v505 = vadd.f32 %v503, 1e-06
        %v506 = vadd.f32 %v504, 1e-06
        %v507 = vrsqrt.pop %v505
        %v508 = vrsqrt.pop %v506
        %v509 = vmul.f32 %v481, %v507
        %v510 = vmul.f32 %v482, %v508
        %v511 = vmul.f32 %v483, %v507
        %v512 = vmul.f32 %v484, %v508
        %v513 = vld [vmem:[%s2] sm:$0xff]
        %v514 = vld [vmem:[%s2 + $0x8] sm:$0xff]
        %516 = vset.pattern.permute.xlu0 0
        %517 = vperm.xlu0 %516, %v513
        %v518 = vpop.permute.xlu0 %517
        %521 = vset.pattern.permute.xlu0 0
        %522 = vperm.xlu0 %521, %v514
        %v523 = vpop.permute.xlu0 %522
        %v525 = vmul.f32 %v509, %v518
        %v526 = vmul.f32 %v510, %v518
        %v527 = vmul.f32 %v511, %v523
        %v528 = vmul.f32 %v512, %v523
        %v529 = vld [vmem:[%s3] sm:$0xff]
        %v530 = vld [vmem:[%s3 + $0x8] sm:$0xff]
        %532 = vset.pattern.permute.xlu0 0
        %533 = vperm.xlu0 %532, %v529
        %v534 = vpop.permute.xlu0 %533
        %537 = vset.pattern.permute.xlu0 0
        %538 = vperm.xlu0 %537, %v530
        %v539 = vpop.permute.xlu0 %538
        %v541 = vadd.f32 %v525, %v534
        %v542 = vadd.f32 %v526, %v534
        %v543 = vadd.f32 %v527, %v539
        %v544 = vadd.f32 %v528, %v539
        %v545 = vmul.f32 %v541, 0.5
        %v546 = vmul.f32 %v542, 0.5
        %v547 = vmul.f32 %v543, 0.5
        %v548 = vmul.f32 %v544, 0.5
        %v549 = vmul.f32 %v541, 0.70710677
        %v550 = vmul.f32 %v542, 0.70710677
        %v551 = vmul.f32 %v543, 0.70710677
        %v552 = vmul.f32 %v544, 0.70710677
        %v553 = verf.f32.pop %v549
        %v554 = verf.f32.pop %v550
        %v555 = verf.f32.pop %v551
        %v556 = verf.f32.pop %v552
        %v557 = vadd.f32 %v553, 1.0
        %v558 = vadd.f32 %v554, 1.0
        %v559 = vadd.f32 %v555, 1.0
        %v560 = vadd.f32 %v556, 1.0
        %v561 = vmul.f32 %v545, %v557
        %v562 = vmul.f32 %v546, %v558
        %v563 = vmul.f32 %v547, %v559
        %v564 = vmul.f32 %v548, %v560
        %565 = vst [vmem:[%s233] sm:$0xff] %v561
        %566 = vst [vmem:[%s233 + $0x8] sm:$0xff] %v562
        %567 = vst [vmem:[%s233 + $0x10] sm:$0xff] %v563
        %568 = vst [vmem:[%s233 + $0x18] sm:$0xff] %v564
        %s569 = sand.u32 %s134, 1
        %s570 = scalar_lea.sflag [#allocation4], %s569
        %s571 = sand.u32 %s134, 1
        %s572 = smul.addr %s571, 32
        %s573 = scalar_lea.vmem [#allocation5], %s572
        // Predicated region
        $region41: #{tpu_custom_call.1} parent=35 // pred_check
          %p574 = pneg %p144
        $region42: #{tpu_custom_call.1} parent=35 // pred_check_branch
          %576 = sbr.rel (%p574) target = $region44
        $region43: #{tpu_custom_call.1} parent=35 // pred_region
          %s577 = smul.u32 2, %s26
          %s579 = ssub.s32 512, 512
          %580 = vsyncadd %s570, %s579
          %s581 = smul.addr %s25, 4
          %s582 = sadd.s32 %s577, %s581
          %s583 = smul.addr %s582, 128
          %s584 = scalar_lea.hbm %s4, %s583
          %s585 = sshll.u32 %s573, 4
          %s586 = int_to_ptr.vmem [resolvable:$true] %s585
          %591 = dma.vmem_to_hbm [thread:$0]  %s586, 512, %s584, %s570, 256, 256, 16
        $region44: #{tpu_custom_call.1} parent=35 // pred_fallthru
          _
      $region36: #{tpu_custom_call.1} parent=5 // pred_fallthru
        _
      %p592 = scmp.le.s32.totalorder 2, %s16
      // Predicated region
      $region45: #{tpu_custom_call.1} parent=5 // pred_check
        %p593 = pneg %p592
      $region46: #{tpu_custom_call.1} parent=5 // pred_check_branch
        %595 = sbr.rel (%p593) target = $region48
      $region47: #{tpu_custom_call.1} parent=5 // pred_region
        %s596 = ssub.s32 %s16, 2
        // Predicated region
        $region49: #{tpu_custom_call.1} parent=47 // pred_check
          %p597 = pneg %p150
        $region50: #{tpu_custom_call.1} parent=47 // pred_check_branch
          %599 = sbr.rel (%p597) target = $region52
        $region51: #{tpu_custom_call.1} parent=47 // pred_region
          %s600 = sand.u32 %s135, 1
          %s601 = scalar_lea.sflag [#allocation4], %s600
          %s602 = sand.u32 %s135, 1
          %s603 = smul.addr %s602, 32
          %s604 = scalar_lea.vmem [#allocation5], %s603
          %605 = dma.done %s601, 512
        $region52: #{tpu_custom_call.1} parent=47 // pred_fallthru
          _
      $region48: #{tpu_custom_call.1} parent=5 // pred_fallthru
        _
    $region6: #{tpu_custom_call.1} parent=1 // loop_footer
      %s20 = sadd.s32 1, %s16
    $region7: #{tpu_custom_call.1} parent=1 // loop_footer_branch
      %15 = sbr.rel target = $region3
    $region8: #{tpu_custom_call.1} parent=1 // loop_exit
      _
    %606 = vsyncpa [#allocation3], 1
    %s607 = scalar_lea.sflag [#allocation3], 1
    %608 = vsyncpa %s607, 1
    %609 = vsyncpa [#allocation4], 1
    %s610 = scalar_lea.sflag [#allocation4], 1
    %611 = vsyncpa %s610, 1

</llo_original>
